<compile_context>
chip_gen: v6e
topology: v6e:2x2x1
jax: 0.10.0
libtpu: 0.0.40
codegen_flags: <defaults>
</compile_context>

<pallas_src>
import jax
import jax.numpy as jnp
from jax.experimental import pallas as pl
from jax.experimental.pallas import tpu as pltpu


def _round_up(x, m):
    return ((x + m - 1) // m) * m


def _block_diag(blocks):
    """blocks: (nb, bs, bs) -> block-diagonal (nb*bs, nb*bs)."""
    nb, bs, _ = blocks.shape
    eye = jnp.eye(nb, dtype=blocks.dtype)
    return jnp.einsum("kij,kl->kilj", blocks, eye).reshape(nb * bs, nb * bs)


# ----------------------------- Pallas kernel --------------------------------
def _make_afno_mlp_kernel(C):
    def kernel(xr_ref, xi_ref, w1_ref, b1_ref, w2p_ref, w2c_ref, b2_ref, o_ref):
        # xr/xi: (TM, C) f32   real / imag FFT coefficients (cast to bf16 here)
        # w1:    (2C, 2C) bf16 [[W1r, W1i], [-W1i, W1r]]   (block-diag inside)
        # b1:    (1, 2C) f32   [b1r | b1i]
        # w2p:   (2C, 2C) bf16 [[W2r, 0], [-W2i, W2r]]
        # w2c:   (C, 2C) bf16  [0 | W2i]
        # b2:    (1, 2C) f32   [b2r | b2i]
        # o:     (TM, 2C) f32  packed [o_r | o_i]  (single lane-dense store)
        xr = xr_ref[...].astype(jnp.bfloat16)
        xi = xi_ref[...].astype(jnp.bfloat16)

        # Layer 1: packed complex matmul  h = relu([xr|xi] @ W1p + b1),
        # implemented as two K=C dots against the row halves of W1p (avoids an
        # in-kernel lane concat; identical MXU cost at this size).
        h = (jnp.dot(xr, w1_ref[:C, :], preferred_element_type=jnp.float32)
             + jnp.dot(xi, w1_ref[C:, :], preferred_element_type=jnp.float32))
        h = jnp.maximum(h + b1_ref[...], 0.0)              # (TM, 2C) f32 [h_r|h_i]
        h_bf = h.astype(jnp.bfloat16)

        # Layer 2, dot #1 (fused): t = [h_r@W2r - h_i@W2i + b2r | h_i@W2r + b2i]
        t = (jnp.dot(h_bf, w2p_ref[...], preferred_element_type=jnp.float32)
             + b2_ref[...])
        o_r = t[:, :C]                                      # real output (with bias)

        # Layer 2, dot #2: reference-module quirk -- imag output uses the
        # ALREADY-UPDATED real output:  o_i = o_r @ W2i + h_i @ W2r + b2i.
        # w2c = [0 | W2i], so the dot adds the o_r@W2i term only to the imag
        # half and the full packed [o_r | o_i] slab is stored in one go.
        o_ref[...] = t + jnp.dot(o_r.astype(jnp.bfloat16), w2c_ref[...],
                                 preferred_element_type=jnp.float32)

    return kernel


def _tile_and_vmem(M, C):
    """Per-generation tile size (rows) and VMEM limit."""
    try:
        kind = jax.devices()[0].device_kind.lower()
    except Exception:  # pragma: no cover - defensive
        kind = ""
    if "v7" in kind:
        # v7x: 64 MiB physical VMEM, 2 TensorCores per chip.
        tm_cap, vmem_cap = 512, 48 * 1024 * 1024
    else:
        # v5e / v6e: 128 MiB physical VMEM -> bigger tiles amortize the
        # ~0.35 us per-grid-step overhead and push toward the HBM roofline.
        tm_cap, vmem_cap = 1024, 80 * 1024 * 1024

    # >= 2 grid steps whenever M allows it (v7x shards the "parallel" axis
    # across its 2 TensorCores; grid=(1,) would leave one idle).
    TM = min(tm_cap, _round_up(max(-(-M // 2), 8), 8))

    def vmem_need(tm):
        acts = 2 * (2 * tm * C * 4 + tm * 2 * C * 4)           # dbl-buffered in/out
        wts = 2 * (2 * (2 * C) * (2 * C) * 2 + C * (2 * C) * 2 + 2 * (2 * C) * 4)
        return acts + wts

    while TM > 8 and vmem_need(TM) > vmem_cap // 2:
        TM = _round_up(TM // 2, 8)
    vmem_limit = int(min(max(4 * vmem_need(TM), 32 * 1024 * 1024), vmem_cap))
    return TM, vmem_limit


def afno_block_mlp(xr, xi, w1p, b1p, w2p, w2c, b2p, *, C, TM, vmem_limit):
    """xr/xi: (Mp, C) f32. Returns packed (Mp, 2C) f32 [o_r | o_i]."""
    Mp = xr.shape[0]
    grid = (Mp // TM,)
    kernel = _make_afno_mlp_kernel(C)
    return pl.pallas_call(
        kernel,
        out_shape=jax.ShapeDtypeStruct((Mp, 2 * C), jnp.float32),
        grid_spec=pltpu.PrefetchScalarGridSpec(
            num_scalar_prefetch=0,
            grid=grid,
            in_specs=[
                pl.BlockSpec((TM, C), lambda m: (m, 0)),          # xr tile
                pl.BlockSpec((TM, C), lambda m: (m, 0)),          # xi tile
                # Resident weights / biases (constant index_map -> fetched once).
                # TODO(synk): for the real C=768 config, single-buffer these
                # (pipeline_mode=pl.Buffered(1) or scratch preload) and group-fold
                # blocks to the MXU width (128 on v5e, 256 on v6e/v7x) instead of
                # the full fold; at C=32 the weight VMEM is negligible.
                pl.BlockSpec((2 * C, 2 * C), lambda m: (0, 0)),   # W1 packed
                pl.BlockSpec((1, 2 * C), lambda m: (0, 0)),       # b1 packed
                pl.BlockSpec((2 * C, 2 * C), lambda m: (0, 0)),   # W2 packed
                pl.BlockSpec((C, 2 * C), lambda m: (0, 0)),       # [0 | W2i]
                pl.BlockSpec((1, 2 * C), lambda m: (0, 0)),       # b2 packed
            ],
            out_specs=pl.BlockSpec((TM, 2 * C), lambda m: (m, 0)),
        ),
        compiler_params=pltpu.CompilerParams(
            dimension_semantics=("parallel",),                    # megacore / v7x
            vmem_limit_bytes=vmem_limit),
    )(xr, xi, w1p, b1p, w2p, w2c, b2p)


# ------------------------------ Forward pass ---------------------------------
def afno_forward(x, params, *, h, w, num_blocks):
    """x: (B, N, C) f32, N == h*w.  Returns (B, N, C) f32."""
    B, N, C = x.shape
    assert N == h * w and C % num_blocks == 0

    # fno_bias = False  ->  the Conv1d bias path is identically zero; dropped.
    # TODO(synk): fno_bias=True (Conv1d over channels) not implemented here.
    # TODO(synk): softshrink skipped (fno_softshrink = 0.0 in this config).

    xg = x.reshape(B, h, w, C)
    X = jnp.fft.rfft2(xg, axes=(1, 2), norm="ortho")          # (B, h, wf, C) c64
    wf = X.shape[2]
    M = B * h * wf

    # Channel-last lane-dense layout. Real/imag go in as separate f32 inputs;
    # the bf16 cast happens in VMEM inside the kernel (no bf16 HBM round trip).
    xr = X.real.reshape(M, C).astype(jnp.float32)
    xi = X.imag.reshape(M, C).astype(jnp.float32)

    # Fold all blocks into block-diagonal (C, C) weights (C <= 128 here, so the
    # MXU pads to 128 anyway and the fold is free), then pack real/imag so each
    # layer needs one wide dot (plus one small dot for the serial o_r -> o_i
    # dependency the reference module creates).
    w1, b1, w2, b2 = params["w1"], params["b1"], params["w2"], params["b2"]
    W1r, W1i = _block_diag(w1[0]), _block_diag(w1[1])          # (C, C)
    W2r, W2i = _block_diag(w2[0]), _block_diag(w2[1])          # (C, C)
    Z = jnp.zeros_like(W2r)
    W1p = jnp.concatenate(
        [jnp.concatenate([W1r, W1i], axis=1),
         jnp.concatenate([-W1i, W1r], axis=1)], axis=0).astype(jnp.bfloat16)
    W2p = jnp.concatenate(
        [jnp.concatenate([W2r, Z], axis=1),
         jnp.concatenate([-W2i, W2r], axis=1)], axis=0).astype(jnp.bfloat16)
    W2c = jnp.concatenate([Z, W2i], axis=1).astype(jnp.bfloat16)       # (C, 2C)
    b1p = jnp.concatenate([b1[0].reshape(C), b1[1].reshape(C)])[None, :]
    b2p = jnp.concatenate([b2[0].reshape(C), b2[1].reshape(C)])[None, :]
    b1p = b1p.astype(jnp.float32)
    b2p = b2p.astype(jnp.float32)

    TM, vmem_limit = _tile_and_vmem(M, C)
    Mp = _round_up(M, TM)
    if Mp != M:
        pad = ((0, Mp - M), (0, 0))
        xr = jnp.pad(xr, pad)
        xi = jnp.pad(xi, pad)
        # NOTE: padded rows produce nonzero garbage (relu(b1)@W2 + b2); they are
        # sliced off below and must never be reduced over before slicing.

    o = afno_block_mlp(xr, xi, W1p, b1p, W2p, W2c, b2p,
                       C=C, TM=TM, vmem_limit=vmem_limit)
    o = o[:M]
    o_r = o[:, :C].reshape(B, h, wf, C)
    o_i = o[:, C:].reshape(B, h, wf, C)

    Xo = jax.lax.complex(o_r, o_i)
    y = jnp.fft.irfft2(Xo, s=(h, w), axes=(1, 2), norm="ortho")  # (B, h, w, C)
    return y.reshape(B, N, C)


# Pure-JAX f32 reference (same math as the PyTorch module, incl. the quirk).
def _afno_forward_ref(x, params, *, h, w, num_blocks):
    B, N, C = x.shape
    bs = C // num_blocks
    w1, b1, w2, b2 = params["w1"], params["b1"], params["w2"], params["b2"]
    X = jnp.fft.rfft2(x.reshape(B, h, w, C), axes=(1, 2), norm="ortho")
    X = X.reshape(B, h, X.shape[2], num_blocks, bs)
    mul = lambda inp, wt: jnp.einsum("...bd,bdk->...bk", inp, wt)
    hr = jax.nn.relu(mul(X.real, w1[0]) - mul(X.imag, w1[1]) + b1[0])
    hi = jax.nn.relu(mul(X.real, w1[1]) + mul(X.imag, w1[0]) + b1[1])
    o_r = mul(hr, w2[0]) - mul(hi, w2[1]) + b2[0]
    o_i = mul(o_r, w2[1]) + mul(hi, w2[0]) + b2[1]     # quirk: uses updated o_r
    Xo = (o_r + 1j * o_i).reshape(B, h, X.shape[2], C)
    y = jnp.fft.irfft2(Xo, s=(h, w), axes=(1, 2), norm="ortho").reshape(B, N, C)
    return y


# ---------------------------------- Main --------------------------------------
if __name__ == "__main__":
    # Small synthetic shapes: dim=C=32, h=w=8 (N=64), num_blocks=4 -> block=8
    B, hh, ww, C = 2, 8, 8, 32
    num_blocks = 4
    bs = C // num_blocks
    N = hh * ww
    scale = 0.02

    key = jax.random.PRNGKey(0)
    k_x, k_w1, k_b1, k_w2, k_b2 = jax.random.split(key, 5)

    x = jax.random.normal(k_x, (B, N, C), dtype=jnp.float32)
    params = {
        "w1": scale * jax.random.normal(k_w1, (2, num_blocks, bs, bs), jnp.float32),
        "b1": scale * jax.random.normal(k_b1, (2, num_blocks, bs), jnp.float32),
        "w2": scale * jax.random.normal(k_w2, (2, num_blocks, bs, bs), jnp.float32),
        "b2": scale * jax.random.normal(k_b2, (2, num_blocks, bs), jnp.float32),
    }

    fwd = jax.jit(lambda x: afno_forward(x, params, h=hh, w=ww,
                                         num_blocks=num_blocks))
    out = jax.block_until_ready(fwd(x))
    assert out.shape == (B, N, C) and out.dtype == jnp.float32

    ref = _afno_forward_ref(x, params, h=hh, w=ww, num_blocks=num_blocks)
    # bf16 matmul inputs (f32 accumulation) -> compare with a loose tolerance
    # relative to the activation scale.
    err = float(jnp.max(jnp.abs(out - ref)))
    tol = 5e-2 * float(jnp.max(jnp.abs(ref))) + 1e-3
    assert err <= tol, (err, tol)

    print("KERNEL_OK")
</pallas_src>

<mosaic_0001>
module attributes {stable_mosaic.version = 11 : i64} {
  func.func @kernel(%arg0: i32, %arg1: memref<40x32xf32, #tpu.memory_space<vmem>>, %arg2: memref<40x32xf32, #tpu.memory_space<vmem>>, %arg3: memref<64x64xbf16, #tpu.memory_space<vmem>>, %arg4: memref<1x64xf32, #tpu.memory_space<vmem>>, %arg5: memref<64x64xbf16, #tpu.memory_space<vmem>>, %arg6: memref<32x64xbf16, #tpu.memory_space<vmem>>, %arg7: memref<1x64xf32, #tpu.memory_space<vmem>>, %arg8: memref<40x64xf32, #tpu.memory_space<vmem>>) attributes {dimension_semantics = [#tpu.dimension_semantics<parallel>], iteration_bounds = array<i64: 2>, scalar_prefetch = 0 : i64, scratch_operands = 0 : i64, tpu.core_type = #tpu.core_type<tc>, window_params = [{transform_indices = @transform_0, window_bounds = array<i64: 40, 32>}, {transform_indices = @transform_1, window_bounds = array<i64: 40, 32>}, {pipeline_mode = #tpu.pipeline_mode<synchronous>, transform_indices = @transform_2, window_bounds = array<i64: 64, 64>}, {pipeline_mode = #tpu.pipeline_mode<synchronous>, transform_indices = @transform_3, window_bounds = array<i64: 1, 64>}, {pipeline_mode = #tpu.pipeline_mode<synchronous>, transform_indices = @transform_4, window_bounds = array<i64: 64, 64>}, {pipeline_mode = #tpu.pipeline_mode<synchronous>, transform_indices = @transform_5, window_bounds = array<i64: 32, 64>}, {pipeline_mode = #tpu.pipeline_mode<synchronous>, transform_indices = @transform_6, window_bounds = array<i64: 1, 64>}, {transform_indices = @transform_7, window_bounds = array<i64: 40, 64>}]} {
    %c0 = arith.constant 0 : index
    %c0_0 = arith.constant 0 : index
    %0 = vector.load %arg1[%c0, %c0_0] : memref<40x32xf32, #tpu.memory_space<vmem>>, vector<40x32xf32>
    %1 = arith.truncf %0 : vector<40x32xf32> to vector<40x32xbf16>
    %c0_1 = arith.constant 0 : index
    %c0_2 = arith.constant 0 : index
    %2 = vector.load %arg2[%c0_1, %c0_2] : memref<40x32xf32, #tpu.memory_space<vmem>>, vector<40x32xf32>
    %3 = arith.truncf %2 : vector<40x32xf32> to vector<40x32xbf16>
    %c0_3 = arith.constant 0 : index
    %c0_4 = arith.constant 0 : index
    %4 = vector.load %arg3[%c0_3, %c0_4] : memref<64x64xbf16, #tpu.memory_space<vmem>>, vector<32x64xbf16>
    %cst = arith.constant dense<0.000000e+00> : vector<40x64xf32>
    %5 = tpu.matmul %1, %4, %cst {dimension_numbers = #tpu.dot_dimension_numbers<[1], [0], [0], [1], [0, 0, 1, 1], [], []>} : vector<40x32xbf16>, vector<32x64xbf16>, vector<40x64xf32> -> vector<40x64xf32>
    %c32 = arith.constant 32 : index
    %c0_5 = arith.constant 0 : index
    %6 = vector.load %arg3[%c32, %c0_5] : memref<64x64xbf16, #tpu.memory_space<vmem>>, vector<32x64xbf16>
    %cst_6 = arith.constant dense<0.000000e+00> : vector<40x64xf32>
    %7 = tpu.matmul %3, %6, %cst_6 {dimension_numbers = #tpu.dot_dimension_numbers<[1], [0], [0], [1], [0, 0, 1, 1], [], []>} : vector<40x32xbf16>, vector<32x64xbf16>, vector<40x64xf32> -> vector<40x64xf32>
    %8 = arith.addf %5, %7 : vector<40x64xf32>
    %c0_7 = arith.constant 0 : index
    %c0_8 = arith.constant 0 : index
    %9 = vector.load %arg4[%c0_7, %c0_8] : memref<1x64xf32, #tpu.memory_space<vmem>>, vector<1x64xf32>
    %10 = vector.broadcast %9 : vector<1x64xf32> to vector<40x64xf32>
    %11 = arith.addf %8, %10 : vector<40x64xf32>
    %cst_9 = arith.constant 0.000000e+00 : f32
    %12 = vector.broadcast %cst_9 : f32 to vector<40x64xf32>
    %13 = arith.maximumf %11, %12 : vector<40x64xf32>
    %14 = arith.truncf %13 : vector<40x64xf32> to vector<40x64xbf16>
    %c0_10 = arith.constant 0 : index
    %c0_11 = arith.constant 0 : index
    %15 = vector.load %arg5[%c0_10, %c0_11] : memref<64x64xbf16, #tpu.memory_space<vmem>>, vector<64x64xbf16>
    %cst_12 = arith.constant dense<0.000000e+00> : vector<40x64xf32>
    %16 = tpu.matmul %14, %15, %cst_12 {dimension_numbers = #tpu.dot_dimension_numbers<[1], [0], [0], [1], [0, 0, 1, 1], [], []>} : vector<40x64xbf16>, vector<64x64xbf16>, vector<40x64xf32> -> vector<40x64xf32>
    %c0_13 = arith.constant 0 : index
    %c0_14 = arith.constant 0 : index
    %17 = vector.load %arg7[%c0_13, %c0_14] : memref<1x64xf32, #tpu.memory_space<vmem>>, vector<1x64xf32>
    %18 = vector.broadcast %17 : vector<1x64xf32> to vector<40x64xf32>
    %19 = arith.addf %16, %18 : vector<40x64xf32>
    %20 = vector.extract_strided_slice %19 {offsets = [0, 0], sizes = [40, 32], strides = [1, 1]} : vector<40x64xf32> to vector<40x32xf32>
    %21 = arith.truncf %20 : vector<40x32xf32> to vector<40x32xbf16>
    %c0_15 = arith.constant 0 : index
    %c0_16 = arith.constant 0 : index
    %22 = vector.load %arg6[%c0_15, %c0_16] : memref<32x64xbf16, #tpu.memory_space<vmem>>, vector<32x64xbf16>
    %cst_17 = arith.constant dense<0.000000e+00> : vector<40x64xf32>
    %23 = tpu.matmul %21, %22, %cst_17 {dimension_numbers = #tpu.dot_dimension_numbers<[1], [0], [0], [1], [0, 0, 1, 1], [], []>} : vector<40x32xbf16>, vector<32x64xbf16>, vector<40x64xf32> -> vector<40x64xf32>
    %24 = arith.addf %19, %23 : vector<40x64xf32>
    %c0_18 = arith.constant 0 : index
    %c0_19 = arith.constant 0 : index
    %25 = vector.load %arg8[%c0_18, %c0_19] : memref<40x64xf32, #tpu.memory_space<vmem>>, vector<40x64xf32>
    tpu.vector_store %arg8[%c0_18, %c0_19], %24 {strides = array<i32>} : memref<40x64xf32, #tpu.memory_space<vmem>>, vector<40x64xf32>,
    return
  }
  func.func @transform_0(%arg0: i32) -> (i32, i32) {
    %c0_i32 = arith.constant 0 : i32
    %c0_i32_0 = arith.constant 0 : i32
    return %arg0, %c0_i32 : i32, i32
  }
  func.func @transform_1(%arg0: i32) -> (i32, i32) {
    %c0_i32 = arith.constant 0 : i32
    %c0_i32_0 = arith.constant 0 : i32
    return %arg0, %c0_i32 : i32, i32
  }
  func.func @transform_2(%arg0: i32) -> (i32, i32) {
    %c0_i32 = arith.constant 0 : i32
    %c0_i32_0 = arith.constant 0 : i32
    %c0_i32_1 = arith.constant 0 : i32
    return %c0_i32, %c0_i32_0 : i32, i32
  }
  func.func @transform_3(%arg0: i32) -> (i32, i32) {
    %c0_i32 = arith.constant 0 : i32
    %c0_i32_0 = arith.constant 0 : i32
    %c0_i32_1 = arith.constant 0 : i32
    return %c0_i32, %c0_i32_0 : i32, i32
  }
  func.func @transform_4(%arg0: i32) -> (i32, i32) {
    %c0_i32 = arith.constant 0 : i32
    %c0_i32_0 = arith.constant 0 : i32
    %c0_i32_1 = arith.constant 0 : i32
    return %c0_i32, %c0_i32_0 : i32, i32
  }
  func.func @transform_5(%arg0: i32) -> (i32, i32) {
    %c0_i32 = arith.constant 0 : i32
    %c0_i32_0 = arith.constant 0 : i32
    %c0_i32_1 = arith.constant 0 : i32
    return %c0_i32, %c0_i32_0 : i32, i32
  }
  func.func @transform_6(%arg0: i32) -> (i32, i32) {
    %c0_i32 = arith.constant 0 : i32
    %c0_i32_0 = arith.constant 0 : i32
    %c0_i32_1 = arith.constant 0 : i32
    return %c0_i32, %c0_i32_0 : i32, i32
  }
  func.func @transform_7(%arg0: i32) -> (i32, i32) {
    %c0_i32 = arith.constant 0 : i32
    %c0_i32_0 = arith.constant 0 : i32
    return %arg0, %c0_i32 : i32, i32
  }
}

</mosaic_0001>

<llo_original>
// kernel: reverse.1
$region0: #{reverse.1}
  #allocation0 [shape = 's32[1]{0}', space=sflag, size = 0x4, scoped, tag = 'scoped memory for reverse.1']
  %s0 = inlined_call_operand.vmem [shape: f32[2,32,8,3], index: 0, kind: input, shape index: {}]
  %s1 = inlined_call_operand.vmem [shape: f32[2,32,8,3], index: 1, kind: output, shape index: {}]
  %s2 = scalar_lea.vmem %s0, 16
  %v3 = vld [vmem:[%s2] sm:$0xff]
  %4 = vst [vmem:[%s1] sm:$0xff] %v3
  %s5 = scalar_lea.vmem %s0, 40
  %v6 = vld [vmem:[%s5] sm:$0xff]
  %s7 = scalar_lea.vmem %s1, 24
  %8 = vst [vmem:[%s7] sm:$0xff] %v6
  %s9 = scalar_lea.vmem %s0, 8
  %v10 = vld [vmem:[%s9] sm:$0xff]
  %s11 = scalar_lea.vmem %s1, 8
  %12 = vst [vmem:[%s11] sm:$0xff] %v10
  %s13 = scalar_lea.vmem %s0, 32
  %v14 = vld [vmem:[%s13] sm:$0xff]
  %s15 = scalar_lea.vmem %s1, 32
  %16 = vst [vmem:[%s15] sm:$0xff] %v14
  %v17 = vld [vmem:[%s0] sm:$0xff]
  %s18 = scalar_lea.vmem %s1, 16
  %19 = vst [vmem:[%s18] sm:$0xff] %v17
  %s20 = scalar_lea.vmem %s0, 24
  %v21 = vld [vmem:[%s20] sm:$0xff]
  %s22 = scalar_lea.vmem %s1, 40
  %23 = vst [vmem:[%s22] sm:$0xff] %v21

// kernel: _lambda_.1
$region0: #{_lambda_.1}
  #allocation0 [shape = 'u32[]', space=smem, size = 0x4, offset = 0x4, fixed_abs, tag = 'smem constant byte address 0x4 - core index']
  #allocation1 [shape = 'u32[144,128]{1,0:T(1,128)}', space=vmem, size = 0x12000, scoped, tag = 'internal scratch']
  %s0 = inlined_call_operand.vmem [shape: f32[80,32], index: 0, kind: input, shape index: {}]
  %s1 = inlined_call_operand.vmem [shape: f32[80,32], index: 1, kind: input, shape index: {}]
  %s2 = inlined_call_operand.vmem [shape: bf16[64,64], index: 2, kind: input, shape index: {}]
  %s3 = inlined_call_operand.vmem [shape: f32[1,64], index: 3, kind: input, shape index: {}]
  %s4 = inlined_call_operand.vmem [shape: bf16[64,64], index: 4, kind: input, shape index: {}]
  %s5 = inlined_call_operand.vmem [shape: bf16[32,64], index: 5, kind: input, shape index: {}]
  %s6 = inlined_call_operand.vmem [shape: f32[1,64], index: 6, kind: input, shape index: {}]
  %s7 = inlined_call_operand.vmem [shape: f32[80,64], index: 7, kind: output, shape index: {}]
  %s8 = sld [smem:[#allocation0]]
  $region61: #{_lambda_.1} parent=0
    _
  %s10 = ssub.s32 1, %s8
  %s11 = scalar_select 0, %s10, %s8
  loop: start=0, step=1, limit=4
  $region2: #{_lambda_.1} parent=0 // loop_pre_header
    _
  $region3: #{_lambda_.1} parent=0 // loop_header
    %s13 = sphi 0, %s17
    %p14 = scmp.ge.s32.totalorder %s13, 4
    %s23 = sphi 0, %s25
    %s26 = sphi 0, %s23
    %s27 = sphi 0, %s26
    %s43 = sphi 0, %s27
    %s49 = sphi 0, %s51
    %s52 = sphi 0, %s49
    %s53 = sphi 0, %s52
    %s69 = sphi 0, %s53
    %s73 = sphi 0, %s73
    %s75 = sphi 0, %s73
    %s76 = sphi 0, %s75
    %s90 = sphi 0, %s76
    %s94 = sphi 0, %s94
    %s96 = sphi 0, %s94
    %s97 = sphi 0, %s96
    %s111 = sphi 0, %s97
    %s115 = sphi 0, %s115
    %s117 = sphi 0, %s115
    %s118 = sphi 0, %s117
    %s132 = sphi 0, %s118
    %s136 = sphi 0, %s136
    %s138 = sphi 0, %s136
    %s139 = sphi 0, %s138
    %s153 = sphi 0, %s139
    %s157 = sphi 0, %s157
    %s159 = sphi 0, %s157
    %s160 = sphi 0, %s159
    %s174 = sphi 0, %s160
    %s180 = sphi 0, %s182
    %s183 = sphi 0, %s180
    %s184 = sphi 0, %s183
    %s200 = sphi 0, %s184
  $region4: #{_lambda_.1} parent=0 // loop_header_branch
    %16 = sbr.rel (%p14) target = $region8
  $region5: #{_lambda_.1} parent=0 // loop_body
    %s18 = ssub.s32 %s13, 1
    %s19 = ssub.s32 %s13, 2
    %s20 = sadd.s32 %s13, 1
    %s21 = ssub.s32 %s13, %s20
    %p22 = scmp.eq.s32.totalorder %s21, 0
    %s24 = sadd.s32 %s23, 1
    %s25 = scalar_select %p22, %s23, %s24
    %p28 = pneg %p22
    %p29 = scmp.eq.s32.totalorder %s13, 1
    %p30 = por %p28, %p29
    %p31 = scmp.ne.s32.totalorder %s23, %s26
    %p32 = scmp.eq.s32.totalorder %s13, 0
    %p33 = por %p31, %p32
    %p34 = scmp.ne.s32.totalorder %s23, %s26
    %p35 = scmp.eq.s32.totalorder %s18, 1
    %p36 = por %p34, %p35
    %p37 = scmp.ne.s32.totalorder %s26, %s27
    %p38 = scmp.eq.s32.totalorder %s18, 0
    %p39 = por %p37, %p38
    %p40 = scmp.ne.s32.totalorder %s26, %s27
    %p41 = scmp.eq.s32.totalorder %s19, 1
    %p42 = por %p40, %p41
    %p44 = scmp.ne.s32.totalorder %s27, %s43
    %p45 = scmp.eq.s32.totalorder %s19, 0
    %p46 = por %p44, %p45
    %s47 = ssub.s32 %s13, %s20
    %p48 = scmp.eq.s32.totalorder %s47, 0
    %s50 = sadd.s32 %s49, 1
    %s51 = scalar_select %p48, %s49, %s50
    %p54 = pneg %p48
    %p55 = scmp.eq.s32.totalorder %s13, 1
    %p56 = por %p54, %p55
    %p57 = scmp.ne.s32.totalorder %s49, %s52
    %p58 = scmp.eq.s32.totalorder %s13, 0
    %p59 = por %p57, %p58
    %p60 = scmp.ne.s32.totalorder %s49, %s52
    %p61 = scmp.eq.s32.totalorder %s18, 1
    %p62 = por %p60, %p61
    %p63 = scmp.ne.s32.totalorder %s52, %s53
    %p64 = scmp.eq.s32.totalorder %s18, 0
    %p65 = por %p63, %p64
    %p66 = scmp.ne.s32.totalorder %s52, %s53
    %p67 = scmp.eq.s32.totalorder %s19, 1
    %p68 = por %p66, %p67
    %p70 = scmp.ne.s32.totalorder %s53, %s69
    %p71 = scmp.eq.s32.totalorder %s19, 0
    %p72 = por %p70, %p71
    %s74 = sadd.s32 %s73, 1
    %p77 = scmp.eq.s32.totalorder %s13, 1
    %p78 = scmp.ne.s32.totalorder %s73, %s75
    %p79 = scmp.eq.s32.totalorder %s13, 0
    %p80 = por %p78, %p79
    %p81 = scmp.ne.s32.totalorder %s73, %s75
    %p82 = scmp.eq.s32.totalorder %s18, 1
    %p83 = por %p81, %p82
    %p84 = scmp.ne.s32.totalorder %s75, %s76
    %p85 = scmp.eq.s32.totalorder %s18, 0
    %p86 = por %p84, %p85
    %p87 = scmp.ne.s32.totalorder %s75, %s76
    %p88 = scmp.eq.s32.totalorder %s19, 1
    %p89 = por %p87, %p88
    %p91 = scmp.ne.s32.totalorder %s76, %s90
    %p92 = scmp.eq.s32.totalorder %s19, 0
    %p93 = por %p91, %p92
    %s95 = sadd.s32 %s94, 1
    %p98 = scmp.eq.s32.totalorder %s13, 1
    %p99 = scmp.ne.s32.totalorder %s94, %s96
    %p100 = scmp.eq.s32.totalorder %s13, 0
    %p101 = por %p99, %p100
    %p102 = scmp.ne.s32.totalorder %s94, %s96
    %p103 = scmp.eq.s32.totalorder %s18, 1
    %p104 = por %p102, %p103
    %p105 = scmp.ne.s32.totalorder %s96, %s97
    %p106 = scmp.eq.s32.totalorder %s18, 0
    %p107 = por %p105, %p106
    %p108 = scmp.ne.s32.totalorder %s96, %s97
    %p109 = scmp.eq.s32.totalorder %s19, 1
    %p110 = por %p108, %p109
    %p112 = scmp.ne.s32.totalorder %s97, %s111
    %p113 = scmp.eq.s32.totalorder %s19, 0
    %p114 = por %p112, %p113
    %s116 = sadd.s32 %s115, 1
    %p119 = scmp.eq.s32.totalorder %s13, 1
    %p120 = scmp.ne.s32.totalorder %s115, %s117
    %p121 = scmp.eq.s32.totalorder %s13, 0
    %p122 = por %p120, %p121
    %p123 = scmp.ne.s32.totalorder %s115, %s117
    %p124 = scmp.eq.s32.totalorder %s18, 1
    %p125 = por %p123, %p124
    %p126 = scmp.ne.s32.totalorder %s117, %s118
    %p127 = scmp.eq.s32.totalorder %s18, 0
    %p128 = por %p126, %p127
    %p129 = scmp.ne.s32.totalorder %s117, %s118
    %p130 = scmp.eq.s32.totalorder %s19, 1
    %p131 = por %p129, %p130
    %p133 = scmp.ne.s32.totalorder %s118, %s132
    %p134 = scmp.eq.s32.totalorder %s19, 0
    %p135 = por %p133, %p134
    %s137 = sadd.s32 %s136, 1
    %p140 = scmp.eq.s32.totalorder %s13, 1
    %p141 = scmp.ne.s32.totalorder %s136, %s138
    %p142 = scmp.eq.s32.totalorder %s13, 0
    %p143 = por %p141, %p142
    %p144 = scmp.ne.s32.totalorder %s136, %s138
    %p145 = scmp.eq.s32.totalorder %s18, 1
    %p146 = por %p144, %p145
    %p147 = scmp.ne.s32.totalorder %s138, %s139
    %p148 = scmp.eq.s32.totalorder %s18, 0
    %p149 = por %p147, %p148
    %p150 = scmp.ne.s32.totalorder %s138, %s139
    %p151 = scmp.eq.s32.totalorder %s19, 1
    %p152 = por %p150, %p151
    %p154 = scmp.ne.s32.totalorder %s139, %s153
    %p155 = scmp.eq.s32.totalorder %s19, 0
    %p156 = por %p154, %p155
    %s158 = sadd.s32 %s157, 1
    %p161 = scmp.eq.s32.totalorder %s13, 1
    %p162 = scmp.ne.s32.totalorder %s157, %s159
    %p163 = scmp.eq.s32.totalorder %s13, 0
    %p164 = por %p162, %p163
    %p165 = scmp.ne.s32.totalorder %s157, %s159
    %p166 = scmp.eq.s32.totalorder %s18, 1
    %p167 = por %p165, %p166
    %p168 = scmp.ne.s32.totalorder %s159, %s160
    %p169 = scmp.eq.s32.totalorder %s18, 0
    %p170 = por %p168, %p169
    %p171 = scmp.ne.s32.totalorder %s159, %s160
    %p172 = scmp.eq.s32.totalorder %s19, 1
    %p173 = por %p171, %p172
    %p175 = scmp.ne.s32.totalorder %s160, %s174
    %p176 = scmp.eq.s32.totalorder %s19, 0
    %p177 = por %p175, %p176
    %s178 = ssub.s32 %s13, %s20
    %p179 = scmp.eq.s32.totalorder %s178, 0
    %s181 = sadd.s32 %s180, 1
    %s182 = scalar_select %p179, %s180, %s181
    %p185 = pneg %p179
    %p186 = scmp.eq.s32.totalorder %s13, 1
    %p187 = por %p185, %p186
    %p188 = scmp.ne.s32.totalorder %s180, %s183
    %p189 = scmp.eq.s32.totalorder %s13, 0
    %p190 = por %p188, %p189
    %p191 = scmp.ne.s32.totalorder %s180, %s183
    %p192 = scmp.eq.s32.totalorder %s18, 1
    %p193 = por %p191, %p192
    %p194 = scmp.ne.s32.totalorder %s183, %s184
    %p195 = scmp.eq.s32.totalorder %s18, 0
    %p196 = por %p194, %p195
    %p197 = scmp.ne.s32.totalorder %s183, %s184
    %p198 = scmp.eq.s32.totalorder %s19, 1
    %p199 = por %p197, %p198
    %p201 = scmp.ne.s32.totalorder %s184, %s200
    %p202 = scmp.eq.s32.totalorder %s19, 0
    %p203 = por %p201, %p202
    %p204 = scmp.le.s32.totalorder 1, %s13
    %p205 = scmp.lt.s32.totalorder %s13, 3
    %p206 = pnand %p204, %p205
    %p207 = pneg %p206
    // Predicated region
    $region9: #{_lambda_.1} parent=5 // pred_check
      _
    $region10: #{_lambda_.1} parent=5 // pred_check_branch
      %209 = sbr.rel (%p206) target = $region12
    $region11: #{_lambda_.1} parent=5 // pred_region
      %s210 = ssub.s32 %s13, 1
      // Predicated region
      $region13: #{_lambda_.1} parent=11 // pred_check
        %p211 = pneg %p86
      $region14: #{_lambda_.1} parent=11 // pred_check_branch
        %213 = sbr.rel (%p211) target = $region16
      $region15: #{_lambda_.1} parent=11 // pred_region
        _
      $region16: #{_lambda_.1} parent=11 // pred_fallthru
        _
      // Predicated region
      $region17: #{_lambda_.1} parent=11 // pred_check
        %p214 = pneg %p107
      $region18: #{_lambda_.1} parent=11 // pred_check_branch
        %216 = sbr.rel (%p214) target = $region20
      $region19: #{_lambda_.1} parent=11 // pred_region
        _
      $region20: #{_lambda_.1} parent=11 // pred_fallthru
        _
      // Predicated region
      $region21: #{_lambda_.1} parent=11 // pred_check
        %p217 = pneg %p128
      $region22: #{_lambda_.1} parent=11 // pred_check_branch
        %219 = sbr.rel (%p217) target = $region24
      $region23: #{_lambda_.1} parent=11 // pred_region
        _
      $region24: #{_lambda_.1} parent=11 // pred_fallthru
        _
      // Predicated region
      $region25: #{_lambda_.1} parent=11 // pred_check
        %p220 = pneg %p149
      $region26: #{_lambda_.1} parent=11 // pred_check_branch
        %222 = sbr.rel (%p220) target = $region28
      $region27: #{_lambda_.1} parent=11 // pred_region
        _
      $region28: #{_lambda_.1} parent=11 // pred_fallthru
        _
      // Predicated region
      $region29: #{_lambda_.1} parent=11 // pred_check
        %p223 = pneg %p170
      $region30: #{_lambda_.1} parent=11 // pred_check_branch
        %225 = sbr.rel (%p223) target = $region32
      $region31: #{_lambda_.1} parent=11 // pred_region
        _
      $region32: #{_lambda_.1} parent=11 // pred_fallthru
        _
    $region12: #{_lambda_.1} parent=5 // pred_fallthru
      _
    %p226 = scmp.lt.s32.totalorder %s13, 2
    // Predicated region
    $region33: #{_lambda_.1} parent=5 // pred_check
      %p227 = pneg %p226
    $region34: #{_lambda_.1} parent=5 // pred_check_branch
      %229 = sbr.rel (%p227) target = $region36
    $region35: #{_lambda_.1} parent=5 // pred_region
      // Predicated region
      $region37: #{_lambda_.1} parent=35 // pred_check
        %p230 = pneg %p33
      $region38: #{_lambda_.1} parent=35 // pred_check_branch
        %232 = sbr.rel (%p230) target = $region40
      $region39: #{_lambda_.1} parent=35 // pred_region
        %s233 = smul.u32 5, %s13
        %p234 = scmp.lt.s32.totalorder %s233, 9
        %s235 = scalar_select %p234, %s233, 9
        %s236 = smul.addr %s235, 8
        %s237 = scalar_lea.vmem %s0, %s236
        %s238 = smul.u32 5, %s13
      $region40: #{_lambda_.1} parent=35 // pred_fallthru
        _
      // Predicated region
      $region41: #{_lambda_.1} parent=35 // pred_check
        %p239 = pneg %p59
      $region42: #{_lambda_.1} parent=35 // pred_check_branch
        %241 = sbr.rel (%p239) target = $region44
      $region43: #{_lambda_.1} parent=35 // pred_region
        %s242 = smul.u32 5, %s13
        %p243 = scmp.lt.s32.totalorder %s242, 9
        %s244 = scalar_select %p243, %s242, 9
        %s245 = smul.addr %s244, 8
        %s246 = scalar_lea.vmem %s1, %s245
        %s247 = smul.u32 5, %s13
      $region44: #{_lambda_.1} parent=35 // pred_fallthru
        _
    $region36: #{_lambda_.1} parent=5 // pred_fallthru
      _
    %p248 = scmp.le.s32.totalorder 1, %s13
    %p249 = scmp.lt.s32.totalorder %s13, 3
    %p250 = pnand %p248, %p249
    %p251 = pneg %p250
    // Predicated region
    $region45: #{_lambda_.1} parent=5 // pred_check
      _
    $region46: #{_lambda_.1} parent=5 // pred_check_branch
      %253 = sbr.rel (%p250) target = $region48
    $region47: #{_lambda_.1} parent=5 // pred_region
      %s254 = ssub.s32 %s13, 1
      %s255 = smul.u32 5, %s18
      %p256 = scmp.lt.s32.totalorder %s255, 9
      %s257 = scalar_select %p256, %s255, 9
      %s258 = smul.addr %s257, 8
      %s259 = scalar_lea.vmem %s0, %s258
      %p260 = pneg %p39
      %p261 = pneg %p36
      %s262 = smul.u32 5, %s18
      %p263 = scmp.lt.s32.totalorder %s262, 9
      %s264 = scalar_select %p263, %s262, 9
      %s265 = smul.addr %s264, 8
      %s266 = scalar_lea.vmem %s1, %s265
      %p267 = pneg %p65
      %p268 = pneg %p62
      %p269 = pneg %p86
      %p270 = pneg %p83
      %p271 = pneg %p107
      %p272 = pneg %p104
      %p273 = pneg %p128
      %p274 = pneg %p125
      %p275 = pneg %p149
      %p276 = pneg %p146
      %p277 = pneg %p170
      %p278 = pneg %p167
      %p279 = pneg %p196
      %p280 = pneg %p193
      %s281 = smul.u32 5, %s18
      %p282 = scmp.lt.s32.totalorder %s281, 9
      %s283 = scalar_select %p282, %s281, 9
      %s284 = smul.addr %s283, 8
      %s285 = scalar_lea.vmem %s7, %s284
      %s286 = smul.u32 5, %s18
      %p287 = scmp.lt.s32.totalorder %s286, 9
      %s288 = scalar_select %p287, %s286, 9
      %s289 = smul.addr %s288, 8
      %s290 = scalar_lea.vmem %s0, %s289
      %s291 = smul.u32 5, %s18
      %s292 = smul.u32 5, %s18
      %p293 = scmp.lt.s32.totalorder %s292, 9
      %s294 = scalar_select %p293, %s292, 9
      %s295 = smul.addr %s294, 8
      %s296 = scalar_lea.vmem %s1, %s295
      %s297 = smul.u32 5, %s18
      %s298 = smul.u32 5, %s18
      %p299 = scmp.lt.s32.totalorder %s298, 9
      %s300 = scalar_select %p299, %s298, 9
      %s301 = smul.addr %s300, 8
      %s302 = scalar_lea.vmem %s7, %s301
      %s303 = smul.u32 5, %s18
      %v305 = vld [vmem:[%s290] sm:$0xff]
      %v306 = vld [vmem:[%s290 + $0x8] sm:$0xff]
      %v307 = vld [vmem:[%s290 + $0x10] sm:$0xff]
      %v308 = vld [vmem:[%s290 + $0x18] sm:$0xff]
      %v309 = vld [vmem:[%s290 + $0x20] sm:$0xff]
      %v310 = vpack.c.bf16 %v306, %v305
      %v311 = vpack.c.bf16 %v308, %v307
      %v312 = vpack.c.bf16 %v309, %v309
      %v313 = vld [vmem:[%s296] sm:$0xff]
      %v314 = vld [vmem:[%s296 + $0x8] sm:$0xff]
      %v315 = vld [vmem:[%s296 + $0x10] sm:$0xff]
      %v316 = vld [vmem:[%s296 + $0x18] sm:$0xff]
      %v317 = vld [vmem:[%s296 + $0x20] sm:$0xff]
      %v318 = vpack.c.bf16 %v314, %v313
      %v319 = vpack.c.bf16 %v316, %v315
      %v320 = vpack.c.bf16 %v317, %v317
      %v321 = vld [vmem:[%s2] sm:$0xf]
      %v322 = vld [vmem:[%s2 + $0x4] sm:$0xf]
      %v323 = vld [vmem:[%s2 + $0x8] sm:$0xf]
      %v324 = vld [vmem:[%s2 + $0xc] sm:$0xf]
      %v325 = vld [vmem:[%s2 + $0x10] sm:$0xf]
      %v326 = vld [vmem:[%s2 + $0x14] sm:$0xf]
      %v327 = vld [vmem:[%s2 + $0x18] sm:$0xf]
      %v328 = vld [vmem:[%s2 + $0x1c] sm:$0xf]
      %v333 = vunpack.c.l.b16 %v325
      %v334 = vunpack.c.l.b16 %v326
      %v335 = vunpack.c.l.b16 %v327
      %v336 = vunpack.c.l.b16 %v328
      %v337 = vpack.c.b16 %v334, %v333
      %v338 = vpack.c.b16 %v336, %v335
      %vm341 = vcmask 261120
      %v343 = vsel %vm341, %v318, 0
      %v346 = vsel %vm341, %v319, 0
      %v349 = vsel %vm341, %v320, 0
      %351 = vmatprep.subr.bf16.mxu0 0
      %352 = vmatpush1.bf16.msra.mxu0 0
      %353 = vmatprep.subr.bf16.mxu0 0
      %354 = vmatpush1.bf16.msra.mxu0 0
      %355 = vmatprep.subr.bf16.mxu0 0
      %356 = vmatpush1.bf16.msra.mxu0 0
      %357 = vmatprep.subr.bf16.mxu0 0
      %358 = vmatpush1.bf16.msra.mxu0 0
      %359 = vmatprep.subr.bf16.mxu0 0
      %360 = vmatpush1.bf16.msra.mxu0 0
      %361 = vmatprep.subr.bf16.mxu0 0
      %362 = vmatpush1.bf16.msra.mxu0 0
      %363 = vmatprep.subr.bf16.mxu0 0
      %364 = vmatpush1.bf16.msra.mxu0 %v338
      %365 = vmatprep.subr.bf16.mxu0 0
      %366 = vmatpush1.bf16.msra.mxu0 %v337
      %367 = vmatprep.subr.bf16.mxu0 0
      %368 = vmatpush2.bf16.msra.mxu0 0
      %369 = vmatprep.subr.bf16.mxu0 0
      %370 = vmatpush2.bf16.msra.mxu0 0
      %371 = vmatprep.subr.bf16.mxu0 0
      %372 = vmatpush2.bf16.msra.mxu0 0
      %373 = vmatprep.subr.bf16.mxu0 0
      %374 = vmatpush2.bf16.msra.mxu0 0
      %375 = vmatprep.subr.bf16.mxu0 0
      %376 = vmatpush2.bf16.msra.mxu0 0
      %377 = vmatprep.subr.bf16.mxu0 0
      %378 = vmatpush2.bf16.msra.mxu0 0
      %379 = vmatprep.subr.bf16.mxu0 0
      %380 = vmatpush2.bf16.msra.mxu0 0
      %381 = vmatprep.subr.bf16.mxu0 0
      %382 = vmatpush2.bf16.msra.mxu0 0
      %383 = vmatprep.mubr.bf16.mxu0 0
      %384 = vmatmul.mubr.bf16.gmra.mxu0 %v343
      %v385 = vpop.f32.mrf.mxu0
      %v386 = vadd.f32 0.0, %v385
      %v387 = vpop.f32.mrf.mxu0
      %v388 = vpop.f32.mrf.mxu0
      %v389 = vadd.f32 0.0, %v388
      %v390 = vpop.f32.mrf.mxu0
      %391 = vmatprep.mubr.bf16.mxu0 0
      %392 = vmatmul.mubr.bf16.gmra.mxu0 %v346
      %v393 = vpop.f32.mrf.mxu0
      %v394 = vadd.f32 0.0, %v393
      %v395 = vpop.f32.mrf.mxu0
      %v396 = vpop.f32.mrf.mxu0
      %v397 = vadd.f32 0.0, %v396
      %v398 = vpop.f32.mrf.mxu0
      %399 = vmatprep.mubr.bf16.mxu0 0
      %400 = vmatmul.mubr.bf16.gmra.mxu0 %v349
      %v401 = vpop.f32.mrf.mxu0
      %v402 = vadd.f32 0.0, %v401
      %v403 = vpop.f32.mrf.mxu0
      %v404 = vpop.f32.mrf.mxu0
      %v405 = vpop.f32.mrf.mxu0
      %406 = vdwg.mxu0
      %v411 = vunpack.c.l.b16 %v321
      %v412 = vunpack.c.l.b16 %v322
      %v413 = vunpack.c.l.b16 %v323
      %v414 = vunpack.c.l.b16 %v324
      %v415 = vpack.c.b16 %v412, %v411
      %v416 = vpack.c.b16 %v414, %v413
      %v420 = vsel %vm341, %v310, 0
      %v423 = vsel %vm341, %v311, 0
      %v426 = vsel %vm341, %v312, 0
      %428 = vmatprep.subr.bf16.mxu0 0
      %429 = vmatpush1.bf16.msra.mxu0 0
      %430 = vmatprep.subr.bf16.mxu0 0
      %431 = vmatpush1.bf16.msra.mxu0 0
      %432 = vmatprep.subr.bf16.mxu0 0
      %433 = vmatpush1.bf16.msra.mxu0 0
      %434 = vmatprep.subr.bf16.mxu0 0
      %435 = vmatpush1.bf16.msra.mxu0 0
      %436 = vmatprep.subr.bf16.mxu0 0
      %437 = vmatpush1.bf16.msra.mxu0 0
      %438 = vmatprep.subr.bf16.mxu0 0
      %439 = vmatpush1.bf16.msra.mxu0 0
      %440 = vmatprep.subr.bf16.mxu0 0
      %441 = vmatpush1.bf16.msra.mxu0 %v416
      %442 = vmatprep.subr.bf16.mxu0 0
      %443 = vmatpush1.bf16.msra.mxu0 %v415
      %444 = vmatprep.subr.bf16.mxu0 0
      %445 = vmatpush2.bf16.msra.mxu0 0
      %446 = vmatprep.subr.bf16.mxu0 0
      %447 = vmatpush2.bf16.msra.mxu0 0
      %448 = vmatprep.subr.bf16.mxu0 0
      %449 = vmatpush2.bf16.msra.mxu0 0
      %450 = vmatprep.subr.bf16.mxu0 0
      %451 = vmatpush2.bf16.msra.mxu0 0
      %452 = vmatprep.subr.bf16.mxu0 0
      %453 = vmatpush2.bf16.msra.mxu0 0
      %454 = vmatprep.subr.bf16.mxu0 0
      %455 = vmatpush2.bf16.msra.mxu0 0
      %456 = vmatprep.subr.bf16.mxu0 0
      %457 = vmatpush2.bf16.msra.mxu0 0
      %458 = vmatprep.subr.bf16.mxu0 0
      %459 = vmatpush2.bf16.msra.mxu0 0
      %460 = vmatprep.mubr.bf16.mxu0 0
      %461 = vmatmul.mubr.bf16.gmra.mxu0 %v420
      %v462 = vpop.f32.mrf.mxu0
      %v463 = vadd.f32 %v386, %v462
      %v464 = vpop.f32.mrf.mxu0
      %v465 = vpop.f32.mrf.mxu0
      %v466 = vadd.f32 %v389, %v465
      %v467 = vpop.f32.mrf.mxu0
      %468 = vmatprep.mubr.bf16.mxu0 0
      %469 = vmatmul.mubr.bf16.gmra.mxu0 %v423
      %v470 = vpop.f32.mrf.mxu0
      %v471 = vadd.f32 %v394, %v470
      %v472 = vpop.f32.mrf.mxu0
      %v473 = vpop.f32.mrf.mxu0
      %v474 = vadd.f32 %v397, %v473
      %v475 = vpop.f32.mrf.mxu0
      %476 = vmatprep.mubr.bf16.mxu0 0
      %477 = vmatmul.mubr.bf16.gmra.mxu0 %v426
      %v478 = vpop.f32.mrf.mxu0
      %v479 = vadd.f32 %v402, %v478
      %v480 = vpop.f32.mrf.mxu0
      %v481 = vpop.f32.mrf.mxu0
      %v482 = vpop.f32.mrf.mxu0
      %483 = vdwg.mxu0
      %v484 = vld [vmem:[%s3] sm:$0x1]
      %v486 = vlaneseq
      %v487 = vshrl.u32 %v486, 7
      %v488 = vsub.s32 0, %v487
      %v489 = vrot.slane %v484, %v488
      %v491 = vadd.f32 %v463, %v489
      %v492 = vadd.f32 %v466, %v489
      %v493 = vadd.f32 %v471, %v489
      %v494 = vadd.f32 %v474, %v489
      %v495 = vadd.f32 %v479, %v489
      %v496 = vmax.f32 %v491, 0.0
      %v497 = vmax.f32 %v492, 0.0
      %v498 = vmax.f32 %v493, 0.0
      %v499 = vmax.f32 %v494, 0.0
      %v500 = vmax.f32 %v495, 0.0
      %v501 = vpack.c.bf16 %v497, %v496
      %v502 = vpack.c.bf16 %v499, %v498
      %v503 = vpack.c.bf16 %v500, %v500
      %v504 = vld [vmem:[%s4] sm:$0xf]
      %v505 = vld [vmem:[%s4 + $0x4] sm:$0xf]
      %v506 = vld [vmem:[%s4 + $0x8] sm:$0xf]
      %v507 = vld [vmem:[%s4 + $0xc] sm:$0xf]
      %v508 = vld [vmem:[%s4 + $0x10] sm:$0xf]
      %v509 = vld [vmem:[%s4 + $0x14] sm:$0xf]
      %v510 = vld [vmem:[%s4 + $0x18] sm:$0xf]
      %v511 = vld [vmem:[%s4 + $0x1c] sm:$0xf]
      %v512 = vld [vmem:[%s6] sm:$0x1]
      %v514 = vlaneseq
      %v515 = vshrl.u32 %v514, 7
      %v516 = vsub.s32 0, %v515
      %v517 = vrot.slane %v512, %v516
      %v527 = vunpack.c.l.b16 %v504
      %v528 = vunpack.c.l.b16 %v505
      %v529 = vunpack.c.l.b16 %v506
      %v530 = vunpack.c.l.b16 %v507
      %v531 = vunpack.c.l.b16 %v508
      %v532 = vunpack.c.l.b16 %v509
      %v533 = vunpack.c.l.b16 %v510
      %v534 = vunpack.c.l.b16 %v511
      %v535 = vpack.c.b16 %v528, %v527
      %v536 = vpack.c.b16 %v530, %v529
      %v537 = vpack.c.b16 %v532, %v531
      %v538 = vpack.c.b16 %v534, %v533
      %vm543 = vcmask 523264
      %v545 = vsel %vm543, %v501, 0
      %v548 = vsel %vm543, %v502, 0
      %v551 = vsel %vm543, %v503, 0
      %553 = vmatprep.subr.bf16.mxu0 0
      %554 = vmatpush1.bf16.msra.mxu0 0
      %555 = vmatprep.subr.bf16.mxu0 0
      %556 = vmatpush1.bf16.msra.mxu0 0
      %557 = vmatprep.subr.bf16.mxu0 0
      %558 = vmatpush1.bf16.msra.mxu0 0
      %559 = vmatprep.subr.bf16.mxu0 0
      %560 = vmatpush1.bf16.msra.mxu0 0
      %561 = vmatprep.subr.bf16.mxu0 0
      %562 = vmatpush1.bf16.msra.mxu0 %v538
      %563 = vmatprep.subr.bf16.mxu0 0
      %564 = vmatpush1.bf16.msra.mxu0 %v537
      %565 = vmatprep.subr.bf16.mxu0 0
      %566 = vmatpush1.bf16.msra.mxu0 %v536
      %567 = vmatprep.subr.bf16.mxu0 0
      %568 = vmatpush1.bf16.msra.mxu0 %v535
      %569 = vmatprep.subr.bf16.mxu0 0
      %570 = vmatpush2.bf16.msra.mxu0 0
      %571 = vmatprep.subr.bf16.mxu0 0
      %572 = vmatpush2.bf16.msra.mxu0 0
      %573 = vmatprep.subr.bf16.mxu0 0
      %574 = vmatpush2.bf16.msra.mxu0 0
      %575 = vmatprep.subr.bf16.mxu0 0
      %576 = vmatpush2.bf16.msra.mxu0 0
      %577 = vmatprep.subr.bf16.mxu0 0
      %578 = vmatpush2.bf16.msra.mxu0 0
      %579 = vmatprep.subr.bf16.mxu0 0
      %580 = vmatpush2.bf16.msra.mxu0 0
      %581 = vmatprep.subr.bf16.mxu0 0
      %582 = vmatpush2.bf16.msra.mxu0 0
      %583 = vmatprep.subr.bf16.mxu0 0
      %584 = vmatpush2.bf16.msra.mxu0 0
      %585 = vmatprep.mubr.bf16.mxu0 0
      %586 = vmatmul.mubr.bf16.gmra.mxu0 %v545
      %v587 = vpop.f32.mrf.mxu0
      %v588 = vadd.f32 %v517, %v587
      %v589 = vpop.f32.mrf.mxu0
      %v590 = vpop.f32.mrf.mxu0
      %v591 = vadd.f32 %v517, %v590
      %v592 = vpop.f32.mrf.mxu0
      %593 = vmatprep.mubr.bf16.mxu0 0
      %594 = vmatmul.mubr.bf16.gmra.mxu0 %v548
      %v595 = vpop.f32.mrf.mxu0
      %v596 = vadd.f32 %v517, %v595
      %v597 = vpop.f32.mrf.mxu0
      %v598 = vpop.f32.mrf.mxu0
      %v599 = vadd.f32 %v517, %v598
      %v600 = vpop.f32.mrf.mxu0
      %601 = vmatprep.mubr.bf16.mxu0 0
      %602 = vmatmul.mubr.bf16.gmra.mxu0 %v551
      %v603 = vpop.f32.mrf.mxu0
      %v604 = vadd.f32 %v517, %v603
      %v605 = vpop.f32.mrf.mxu0
      %v606 = vpop.f32.mrf.mxu0
      %v607 = vpop.f32.mrf.mxu0
      %608 = vdwg.mxu0
      %v609 = vpack.c.bf16 %v591, %v588
      %v610 = vpack.c.bf16 %v599, %v596
      %v611 = vpack.c.bf16 %v604, %v604
      %v612 = vld [vmem:[%s5] sm:$0xf]
      %v613 = vld [vmem:[%s5 + $0x4] sm:$0xf]
      %v614 = vld [vmem:[%s5 + $0x8] sm:$0xf]
      %v615 = vld [vmem:[%s5 + $0xc] sm:$0xf]
      %v620 = vunpack.c.l.b16 %v612
      %v621 = vunpack.c.l.b16 %v613
      %v622 = vunpack.c.l.b16 %v614
      %v623 = vunpack.c.l.b16 %v615
      %v624 = vpack.c.b16 %v621, %v620
      %v625 = vpack.c.b16 %v623, %v622
      %v629 = vsel %vm341, %v609, 0
      %v632 = vsel %vm341, %v610, 0
      %v635 = vsel %vm341, %v611, 0
      %637 = vmatprep.subr.bf16.mxu0 0
      %638 = vmatpush1.bf16.msra.mxu0 0
      %639 = vmatprep.subr.bf16.mxu0 0
      %640 = vmatpush1.bf16.msra.mxu0 0
      %641 = vmatprep.subr.bf16.mxu0 0
      %642 = vmatpush1.bf16.msra.mxu0 0
      %643 = vmatprep.subr.bf16.mxu0 0
      %644 = vmatpush1.bf16.msra.mxu0 0
      %645 = vmatprep.subr.bf16.mxu0 0
      %646 = vmatpush1.bf16.msra.mxu0 0
      %647 = vmatprep.subr.bf16.mxu0 0
      %648 = vmatpush1.bf16.msra.mxu0 0
      %649 = vmatprep.subr.bf16.mxu0 0
      %650 = vmatpush1.bf16.msra.mxu0 %v625
      %651 = vmatprep.subr.bf16.mxu0 0
      %652 = vmatpush1.bf16.msra.mxu0 %v624
      %653 = vmatprep.subr.bf16.mxu0 0
      %654 = vmatpush2.bf16.msra.mxu0 0
      %655 = vmatprep.subr.bf16.mxu0 0
      %656 = vmatpush2.bf16.msra.mxu0 0
      %657 = vmatprep.subr.bf16.mxu0 0
      %658 = vmatpush2.bf16.msra.mxu0 0
      %659 = vmatprep.subr.bf16.mxu0 0
      %660 = vmatpush2.bf16.msra.mxu0 0
      %661 = vmatprep.subr.bf16.mxu0 0
      %662 = vmatpush2.bf16.msra.mxu0 0
      %663 = vmatprep.subr.bf16.mxu0 0
      %664 = vmatpush2.bf16.msra.mxu0 0
      %665 = vmatprep.subr.bf16.mxu0 0
      %666 = vmatpush2.bf16.msra.mxu0 0
      %667 = vmatprep.subr.bf16.mxu0 0
      %668 = vmatpush2.bf16.msra.mxu0 0
      %669 = vmatprep.mubr.bf16.mxu0 0
      %670 = vmatmul.mubr.bf16.gmra.mxu0 %v629
      %v671 = vpop.f32.mrf.mxu0
      %v672 = vadd.f32 0.0, %v671
      %v673 = vpop.f32.mrf.mxu0
      %v674 = vpop.f32.mrf.mxu0
      %v675 = vadd.f32 0.0, %v674
      %v676 = vpop.f32.mrf.mxu0
      %677 = vmatprep.mubr.bf16.mxu0 0
      %678 = vmatmul.mubr.bf16.gmra.mxu0 %v632
      %v679 = vpop.f32.mrf.mxu0
      %v680 = vadd.f32 0.0, %v679
      %v681 = vpop.f32.mrf.mxu0
      %v682 = vpop.f32.mrf.mxu0
      %v683 = vadd.f32 0.0, %v682
      %v684 = vpop.f32.mrf.mxu0
      %685 = vmatprep.mubr.bf16.mxu0 0
      %686 = vmatmul.mubr.bf16.gmra.mxu0 %v635
      %v687 = vpop.f32.mrf.mxu0
      %v688 = vadd.f32 0.0, %v687
      %v689 = vpop.f32.mrf.mxu0
      %v690 = vpop.f32.mrf.mxu0
      %v691 = vpop.f32.mrf.mxu0
      %692 = vdwg.mxu0
      %v693 = vadd.f32 %v588, %v672
      %v694 = vadd.f32 %v591, %v675
      %v695 = vadd.f32 %v596, %v680
      %v696 = vadd.f32 %v599, %v683
      %v697 = vadd.f32 %v604, %v688
      %698 = vst.msk [vmem:[%s302] sm:$0xff] %vm543, %v693
      %699 = vst.msk [vmem:[%s302 + $0x8] sm:$0xff] %vm543, %v694
      %700 = vst.msk [vmem:[%s302 + $0x10] sm:$0xff] %vm543, %v695
      %701 = vst.msk [vmem:[%s302 + $0x18] sm:$0xff] %vm543, %v696
      %702 = vst.msk [vmem:[%s302 + $0x20] sm:$0xff] %vm543, %v697
      %s703 = smul.u32 5, %s18
      %p704 = scmp.lt.s32.totalorder %s703, 9
      %s705 = scalar_select %p704, %s703, 9
      %s706 = smul.addr %s705, 8
      %s707 = scalar_lea.vmem %s7, %s706
      // Predicated region
      $region49: #{_lambda_.1} parent=47 // pred_check
        %p708 = pneg %p193
      $region50: #{_lambda_.1} parent=47 // pred_check_branch
        %710 = sbr.rel (%p708) target = $region52
      $region51: #{_lambda_.1} parent=47 // pred_region
        %s711 = smul.u32 5, %s18
      $region52: #{_lambda_.1} parent=47 // pred_fallthru
        _
    $region48: #{_lambda_.1} parent=5 // pred_fallthru
      _
    %p712 = scmp.le.s32.totalorder 2, %s13
    // Predicated region
    $region53: #{_lambda_.1} parent=5 // pred_check
      %p713 = pneg %p712
    $region54: #{_lambda_.1} parent=5 // pred_check_branch
      %715 = sbr.rel (%p713) target = $region56
    $region55: #{_lambda_.1} parent=5 // pred_region
      %s716 = ssub.s32 %s13, 2
      // Predicated region
      $region57: #{_lambda_.1} parent=55 // pred_check
        %p717 = pneg %p199
      $region58: #{_lambda_.1} parent=55 // pred_check_branch
        %719 = sbr.rel (%p717) target = $region60
      $region59: #{_lambda_.1} parent=55 // pred_region
        %s720 = smul.u32 5, %s19
        %p721 = scmp.lt.s32.totalorder %s720, 9
        %s722 = scalar_select %p721, %s720, 9
        %s723 = smul.addr %s722, 8
        %s724 = scalar_lea.vmem %s7, %s723
      $region60: #{_lambda_.1} parent=55 // pred_fallthru
        _
    $region56: #{_lambda_.1} parent=5 // pred_fallthru
      _
  $region6: #{_lambda_.1} parent=0 // loop_footer
    %s17 = sadd.s32 1, %s13
  $region7: #{_lambda_.1} parent=0 // loop_footer_branch
    %12 = sbr.rel target = $region3
  $region8: #{_lambda_.1} parent=0 // loop_exit
    _

</llo_original>
